<compile_context>
chip_gen: v7x
topology: tpu7x:2x2x1
jax: 0.10.0
libtpu: 0.0.40
codegen_flags: <defaults>
</compile_context>

<pallas_src>
import functools

import jax
import jax.numpy as jnp
from jax import lax
from jax.experimental import pallas as pl
from jax.experimental.pallas import tpu as pltpu

LANES = 128
MAX_TILE_ROWS = 2048   # 2048 x 128 f32 = 1 MiB per input per block
_UNROLL = 8            # chunks unrolled per hardware loop iteration


def _sublane_align(dtype) -> int:
    """Smallest row multiple keeping (rows, 128) blocks tile-aligned for dtype."""
    return max(8, 32 // jnp.dtype(dtype).itemsize)   # f32->8, bf16->16, i8/bool->32


def _num_tensorcores() -> int:
    try:
        kind = jax.devices()[0].device_kind.lower()
    except Exception:
        return 1
    return 2 if "v7" in kind else 1      # v7x has 2 TensorCores; v5e/v6e have 1


_NCORES = _num_tensorcores()


def _make_kernel(binary_targets: bool, chunk_rows: int):
    """Single-pass partial sums: A, B, pos(, neg) per core."""
    sub = chunk_rows // 8   # sublane-groups of 8 per chunk (static)

    def lanewise(v):
        # (chunk_rows, 128) -> (8, 128): tile-aligned reshape + leading-axis sum.
        if sub == 1:
            return v
        return jnp.sum(v.reshape(sub, 8, LANES), axis=0)

    def kernel(p_ref, t_ref, out_ref, *accs):
        i = pl.program_id(1)   # reduction ("arbitrary") axis

        @pl.when(i == 0)
        def _init():
            for a in accs:
                a[...] = jnp.zeros_like(a)

        n_chunks = p_ref.shape[0] // chunk_rows   # static

        def body(c, carry):
            r0 = pl.multiple_of(c * chunk_rows, chunk_rows)
            x = p_ref[pl.ds(r0, chunk_rows), :].astype(jnp.float32)
            t = t_ref[pl.ds(r0, chunk_rows), :].astype(jnp.float32)
            # g = softplus(-x) = log(1 + exp(-|x|)) + max(-x, 0)  (stable form;
            # plain log keeps us on guaranteed Mosaic lowerings, err < 1e-7/elem).
            g = jnp.log(1.0 + jnp.exp(-jnp.abs(x))) + jnp.maximum(-x, 0.0)
            accs[0][...] += lanewise((1.0 - t) * x + g)   # pos_weight-independent
            accs[1][...] += lanewise(t * g)               # coeff of (pos_weight-1)
            if binary_targets:
                accs[2][...] += lanewise(t)               # pos count == sum(t)
            else:
                accs[2][...] += lanewise(jnp.where(t == 1.0, 1.0, 0.0))
                accs[3][...] += lanewise(jnp.where(t == 0.0, 1.0, 0.0))
            return carry

        lax.fori_loop(0, n_chunks, body, 0,
                      unroll=max(1, min(_UNROLL, n_chunks)))

        @pl.when(i == pl.num_programs(1) - 1)
        def _finalize():
            out_ref[0, 0] = jnp.sum(accs[0][...])
            out_ref[0, 1] = jnp.sum(accs[1][...])
            out_ref[0, 2] = jnp.sum(accs[2][...])
            if binary_targets:
                out_ref[0, 3] = jnp.float32(0.0)
            else:
                out_ref[0, 3] = jnp.sum(accs[3][...])

    return kernel


def _partial_sums_jax(x, t, binary_targets):
    """Same partial sums in fused plain JAX (tiny remainders only)."""
    x = x.astype(jnp.float32).reshape(-1)
    t = t.astype(jnp.float32).reshape(-1)
    g = jnp.log1p(jnp.exp(-jnp.abs(x))) + jnp.maximum(-x, 0.0)
    a = jnp.sum((1.0 - t) * x + g)
    b = jnp.sum(t * g)
    if binary_targets:
        pos = jnp.sum(t)
        neg = jnp.float32(0.0)
    else:
        pos = jnp.sum(jnp.where(t == 1.0, 1.0, 0.0))
        neg = jnp.sum(jnp.where(t == 0.0, 1.0, 0.0))
    return jnp.stack([a, b, pos, neg])


@functools.partial(jax.jit, static_argnames=("binary_targets",))
def weighted_bce_loss(pred, target, binary_targets=True):
    """Matches WeightedBCELoss(pos_weight=None)(pred, target) (scalar mean).

    binary_targets=True assumes targets are exactly {0,1} (segmentation masks):
    pos = sum(t), neg = numel - pos.  Use binary_targets=False to reproduce
    PyTorch's exact (t==0)/(t==1) counting for soft labels.
    """
    p = pred.reshape(-1)      # native dtype: no f32 upcast copy in HBM
    t = target.reshape(-1)
    n = p.shape[0]            # static under jit

    sums = jnp.zeros((4,), jnp.float32)   # [A, B, pos, neg]

    rows_total = n // LANES
    rem = n - rows_total * LANES
    align = max(_sublane_align(p.dtype), _sublane_align(t.dtype))

    p2d = t2d = None
    p1d = t1d = None
    if rows_total > 0:
        if rem == 0:
            p2d = p.reshape(rows_total, LANES)   # layout-compatible, free
            t2d = t.reshape(rows_total, LANES)
        else:
            cut = rows_total * LANES             # unaligned numel: rare, small copy
            p2d = p[:cut].reshape(rows_total, LANES)
            t2d = t[:cut].reshape(rows_total, LANES)
            p1d, t1d = p[cut:], t[cut:]
    else:
        p1d, t1d = p, t

    rows_main = 0
    if rows_total >= align:
        ncores = _NCORES if (_NCORES > 1 and rows_total >= 2 * align * _NCORES) else 1
        rpc = (rows_total // ncores) // align * align        # aligned rows per core
        nb_per_core = max(1, -(-rpc // MAX_TILE_ROWS))       # cdiv
        tile_rows = (rpc // nb_per_core) // align * align    # aligned block rows
        rows_main = ncores * nb_per_core * tile_rows
        n_main = rows_main * LANES

        cost = pl.CostEstimate(
            flops=12 * n_main,
            transcendentals=2 * n_main,
            bytes_accessed=rows_main * LANES * (p.dtype.itemsize + t.dtype.itemsize)
            + ncores * 4 * 4,
        )

        if ncores > 1:
            dims = (getattr(pltpu, "CORE_PARALLEL", "parallel"),
                    getattr(pltpu, "ARBITRARY", "arbitrary"))
        else:
            dims = ("arbitrary", "arbitrary")

        n_acc = 3 if binary_targets else 4
        parts = pl.pallas_call(
            _make_kernel(binary_targets, align),
            out_shape=jax.ShapeDtypeStruct((ncores, 4), jnp.float32),
            grid_spec=pltpu.PrefetchScalarGridSpec(
                num_scalar_prefetch=0,
                grid=(ncores, nb_per_core),
                in_specs=[
                    pl.BlockSpec((tile_rows, LANES),
                                 lambda c, i: (c * nb_per_core + i, 0)),
                    pl.BlockSpec((tile_rows, LANES),
                                 lambda c, i: (c * nb_per_core + i, 0)),
                ],
                out_specs=pl.BlockSpec((1, 4), lambda c, i: (c, 0),
                                       memory_space=pltpu.SMEM),
                scratch_shapes=[pltpu.VMEM((8, LANES), jnp.float32)] * n_acc,
            ),
            compiler_params=pltpu.CompilerParams(dimension_semantics=dims),
            cost_estimate=cost,
        )(p2d, t2d)
        sums = sums + jnp.sum(parts, axis=0)

    # Rows not covered by whole kernel blocks (sub-alignment remainder; tiny).
    if p2d is not None and rows_main < rows_total:
        sums = sums + _partial_sums_jax(p2d[rows_main:], t2d[rows_main:],
                                        binary_targets)

    # Ragged sub-128-element tail (only when numel % 128 != 0).
    if p1d is not None and p1d.shape[0] > 0:
        sums = sums + _partial_sums_jax(p1d, t1d, binary_targets)

    sum_a, sum_b, pos, neg = sums[0], sums[1], sums[2], sums[3]
    if binary_targets:
        neg = jnp.float32(n) - pos
    # pos_weight = (neg/total)/(pos/total) = neg/pos.  Clamp pos so an
    # all-negative target stays finite (PyTorch would yield inf/NaN there);
    # when pos == 0, sum_b == 0 anyway, so well-posed results are unchanged.
    pos_weight = neg / jnp.maximum(pos, 1.0)
    loss_sum = sum_a + (pos_weight - 1.0) * sum_b
    return loss_sum / jnp.float32(n)


def _reference(pred, target):
    """Plain-JAX reference replicating F.binary_cross_entropy_with_logits."""
    pred = pred.astype(jnp.float32)
    target = target.astype(jnp.float32)
    neg = jnp.sum((target == 0.0).astype(jnp.float32))
    pos = jnp.sum((target == 1.0).astype(jnp.float32))
    pw = neg / pos
    lw = 1.0 + (pw - 1.0) * target
    loss = (1.0 - target) * pred + lw * (
        jnp.log1p(jnp.exp(-jnp.abs(pred))) + jnp.maximum(-pred, 0.0)
    )
    return jnp.mean(loss)


if __name__ == "__main__":
    key = jax.random.PRNGKey(0)
    k_pred, k_tgt, k_pred2, k_tgt2 = jax.random.split(key, 4)

    # NCHW inputs, as a UNet segmentation head would produce.
    pred = jax.random.normal(k_pred, (2, 4, 16, 16), dtype=jnp.float32)
    target = jax.random.bernoulli(
        k_tgt, p=0.3, shape=(2, 4, 16, 16)).astype(jnp.float32)

    out = jax.block_until_ready(weighted_bce_loss(pred, target))
    ref = _reference(pred, target)
    assert jnp.allclose(out, ref, rtol=1e-5, atol=1e-5), (out, ref)

    # Exact-compare (soft-label-safe) path gives the same answer on {0,1} masks.
    out_exact = jax.block_until_ready(
        weighted_bce_loss(pred, target, binary_targets=False))
    assert jnp.allclose(out_exact, ref, rtol=1e-5, atol=1e-5), (out_exact, ref)

    # Second shape exercises the small row-remainder fallback (and the
    # 2-TensorCore split on v7x).
    pred2 = jax.random.normal(k_pred2, (2, 4, 24, 24), dtype=jnp.float32)
    target2 = jax.random.bernoulli(
        k_tgt2, p=0.3, shape=(2, 4, 24, 24)).astype(jnp.float32)
    out2 = jax.block_until_ready(weighted_bce_loss(pred2, target2))
    ref2 = _reference(pred2, target2)
    assert jnp.allclose(out2, ref2, rtol=1e-5, atol=1e-5), (out2, ref2)

    print("KERNEL_OK")
</pallas_src>

<mosaic_0001>
module attributes {stable_mosaic.version = 11 : i64} {
  func.func @kernel(%arg0: i32, %arg1: i32, %arg2: memref<16x128xf32, #tpu.memory_space<vmem>>, %arg3: memref<16x128xf32, #tpu.memory_space<vmem>>, %arg4: memref<1x4xf32, #tpu.memory_space<smem>>, %arg5: memref<8x128xf32, #tpu.memory_space<vmem>>, %arg6: memref<8x128xf32, #tpu.memory_space<vmem>>, %arg7: memref<8x128xf32, #tpu.memory_space<vmem>>) attributes {dimension_semantics = [#tpu.dimension_semantics<arbitrary>, #tpu.dimension_semantics<arbitrary>], iteration_bounds = array<i64: 1, 1>, scalar_prefetch = 0 : i64, scratch_operands = 3 : i64, tpu.core_type = #tpu.core_type<tc>, window_params = [{transform_indices = @transform_0, window_bounds = array<i64: 16, 128>}, {transform_indices = @transform_1, window_bounds = array<i64: 16, 128>}, {transform_indices = @transform_2, window_bounds = array<i64: 1, 4>}]} {
    %c0_i32 = arith.constant 0 : i32
    %0 = arith.cmpi eq, %arg1, %c0_i32 : i32
    %1 = arith.extui %0 : i1 to i32
    %c0_i32_0 = arith.constant 0 : i32
    %2 = arith.cmpi ne, %1, %c0_i32_0 : i32
    scf.if %2 {
      %cst_41 = arith.constant 0.000000e+00 : f32
      %70 = vector.broadcast %cst_41 : f32 to vector<8x128xf32>
      %c0_42 = arith.constant 0 : index
      %c0_43 = arith.constant 0 : index
      %71 = vector.load %arg5[%c0_42, %c0_43] : memref<8x128xf32, #tpu.memory_space<vmem>>, vector<8x128xf32>
      tpu.vector_store %arg5[%c0_42, %c0_43], %70 {strides = array<i32>} : memref<8x128xf32, #tpu.memory_space<vmem>>, vector<8x128xf32>,
      %cst_44 = arith.constant 0.000000e+00 : f32
      %72 = vector.broadcast %cst_44 : f32 to vector<8x128xf32>
      %c0_45 = arith.constant 0 : index
      %c0_46 = arith.constant 0 : index
      %73 = vector.load %arg6[%c0_45, %c0_46] : memref<8x128xf32, #tpu.memory_space<vmem>>, vector<8x128xf32>
      tpu.vector_store %arg6[%c0_45, %c0_46], %72 {strides = array<i32>} : memref<8x128xf32, #tpu.memory_space<vmem>>, vector<8x128xf32>,
      %cst_47 = arith.constant 0.000000e+00 : f32
      %74 = vector.broadcast %cst_47 : f32 to vector<8x128xf32>
      %c0_48 = arith.constant 0 : index
      %c0_49 = arith.constant 0 : index
      %75 = vector.load %arg7[%c0_48, %c0_49] : memref<8x128xf32, #tpu.memory_space<vmem>>, vector<8x128xf32>
      tpu.vector_store %arg7[%c0_48, %c0_49], %74 {strides = array<i32>} : memref<8x128xf32, #tpu.memory_space<vmem>>, vector<8x128xf32>,
    } else {
    }
    %c0_i32_1 = arith.constant 0 : i32
    %c8_i32 = arith.constant 8 : i32
    %3 = arith.muli %c0_i32_1, %c8_i32 : i32
    %4 = tpu.assume_multiple %3, 8 : i32
    %5 = arith.index_cast %4 : i32 to index
    %c0 = arith.constant 0 : index
    %6 = vector.load %arg2[%5, %c0] : memref<16x128xf32, #tpu.memory_space<vmem>>, vector<8x128xf32>
    %7 = arith.index_cast %4 : i32 to index
    %c0_2 = arith.constant 0 : index
    %8 = vector.load %arg3[%7, %c0_2] : memref<16x128xf32, #tpu.memory_space<vmem>>, vector<8x128xf32>
    %9 = math.absf %6 : vector<8x128xf32>
    %cst = arith.constant 0.000000e+00 : f32
    %10 = vector.broadcast %cst : f32 to vector<8x128xf32>
    %11 = arith.subf %10, %9 : vector<8x128xf32>
    %12 = math.exp %11 : vector<8x128xf32>
    %cst_3 = arith.constant 1.000000e+00 : f32
    %13 = vector.broadcast %cst_3 : f32 to vector<8x128xf32>
    %14 = arith.addf %13, %12 : vector<8x128xf32>
    %15 = math.log %14 : vector<8x128xf32>
    %cst_4 = arith.constant 0.000000e+00 : f32
    %16 = vector.broadcast %cst_4 : f32 to vector<8x128xf32>
    %17 = arith.subf %16, %6 : vector<8x128xf32>
    %cst_5 = arith.constant 0.000000e+00 : f32
    %18 = vector.broadcast %cst_5 : f32 to vector<8x128xf32>
    %19 = arith.maximumf %17, %18 : vector<8x128xf32>
    %20 = arith.addf %15, %19 : vector<8x128xf32>
    %c0_6 = arith.constant 0 : index
    %c0_7 = arith.constant 0 : index
    %21 = vector.load %arg5[%c0_6, %c0_7] : memref<8x128xf32, #tpu.memory_space<vmem>>, vector<8x128xf32>
    %cst_8 = arith.constant 1.000000e+00 : f32
    %22 = vector.broadcast %cst_8 : f32 to vector<8x128xf32>
    %23 = arith.subf %22, %8 : vector<8x128xf32>
    %24 = arith.mulf %23, %6 : vector<8x128xf32>
    %25 = arith.addf %24, %20 : vector<8x128xf32>
    %26 = arith.addf %21, %25 : vector<8x128xf32>
    %c0_9 = arith.constant 0 : index
    %c0_10 = arith.constant 0 : index
    %27 = vector.load %arg5[%c0_9, %c0_10] : memref<8x128xf32, #tpu.memory_space<vmem>>, vector<8x128xf32>
    tpu.vector_store %arg5[%c0_9, %c0_10], %26 {strides = array<i32>} : memref<8x128xf32, #tpu.memory_space<vmem>>, vector<8x128xf32>,
    %c0_11 = arith.constant 0 : index
    %c0_12 = arith.constant 0 : index
    %28 = vector.load %arg6[%c0_11, %c0_12] : memref<8x128xf32, #tpu.memory_space<vmem>>, vector<8x128xf32>
    %29 = arith.mulf %8, %20 : vector<8x128xf32>
    %30 = arith.addf %28, %29 : vector<8x128xf32>
    %c0_13 = arith.constant 0 : index
    %c0_14 = arith.constant 0 : index
    %31 = vector.load %arg6[%c0_13, %c0_14] : memref<8x128xf32, #tpu.memory_space<vmem>>, vector<8x128xf32>
    tpu.vector_store %arg6[%c0_13, %c0_14], %30 {strides = array<i32>} : memref<8x128xf32, #tpu.memory_space<vmem>>, vector<8x128xf32>,
    %c0_15 = arith.constant 0 : index
    %c0_16 = arith.constant 0 : index
    %32 = vector.load %arg7[%c0_15, %c0_16] : memref<8x128xf32, #tpu.memory_space<vmem>>, vector<8x128xf32>
    %33 = arith.addf %32, %8 : vector<8x128xf32>
    %c0_17 = arith.constant 0 : index
    %c0_18 = arith.constant 0 : index
    %34 = vector.load %arg7[%c0_17, %c0_18] : memref<8x128xf32, #tpu.memory_space<vmem>>, vector<8x128xf32>
    tpu.vector_store %arg7[%c0_17, %c0_18], %33 {strides = array<i32>} : memref<8x128xf32, #tpu.memory_space<vmem>>, vector<8x128xf32>,
    %c1_i32 = arith.constant 1 : i32
    %c8_i32_19 = arith.constant 8 : i32
    %35 = arith.muli %c1_i32, %c8_i32_19 : i32
    %36 = tpu.assume_multiple %35, 8 : i32
    %37 = arith.index_cast %36 : i32 to index
    %c0_20 = arith.constant 0 : index
    %38 = vector.load %arg2[%37, %c0_20] : memref<16x128xf32, #tpu.memory_space<vmem>>, vector<8x128xf32>
    %39 = arith.index_cast %36 : i32 to index
    %c0_21 = arith.constant 0 : index
    %40 = vector.load %arg3[%39, %c0_21] : memref<16x128xf32, #tpu.memory_space<vmem>>, vector<8x128xf32>
    %41 = math.absf %38 : vector<8x128xf32>
    %cst_22 = arith.constant 0.000000e+00 : f32
    %42 = vector.broadcast %cst_22 : f32 to vector<8x128xf32>
    %43 = arith.subf %42, %41 : vector<8x128xf32>
    %44 = math.exp %43 : vector<8x128xf32>
    %cst_23 = arith.constant 1.000000e+00 : f32
    %45 = vector.broadcast %cst_23 : f32 to vector<8x128xf32>
    %46 = arith.addf %45, %44 : vector<8x128xf32>
    %47 = math.log %46 : vector<8x128xf32>
    %cst_24 = arith.constant 0.000000e+00 : f32
    %48 = vector.broadcast %cst_24 : f32 to vector<8x128xf32>
    %49 = arith.subf %48, %38 : vector<8x128xf32>
    %cst_25 = arith.constant 0.000000e+00 : f32
    %50 = vector.broadcast %cst_25 : f32 to vector<8x128xf32>
    %51 = arith.maximumf %49, %50 : vector<8x128xf32>
    %52 = arith.addf %47, %51 : vector<8x128xf32>
    %c0_26 = arith.constant 0 : index
    %c0_27 = arith.constant 0 : index
    %53 = vector.load %arg5[%c0_26, %c0_27] : memref<8x128xf32, #tpu.memory_space<vmem>>, vector<8x128xf32>
    %cst_28 = arith.constant 1.000000e+00 : f32
    %54 = vector.broadcast %cst_28 : f32 to vector<8x128xf32>
    %55 = arith.subf %54, %40 : vector<8x128xf32>
    %56 = arith.mulf %55, %38 : vector<8x128xf32>
    %57 = arith.addf %56, %52 : vector<8x128xf32>
    %58 = arith.addf %53, %57 : vector<8x128xf32>
    %c0_29 = arith.constant 0 : index
    %c0_30 = arith.constant 0 : index
    %59 = vector.load %arg5[%c0_29, %c0_30] : memref<8x128xf32, #tpu.memory_space<vmem>>, vector<8x128xf32>
    tpu.vector_store %arg5[%c0_29, %c0_30], %58 {strides = array<i32>} : memref<8x128xf32, #tpu.memory_space<vmem>>, vector<8x128xf32>,
    %c0_31 = arith.constant 0 : index
    %c0_32 = arith.constant 0 : index
    %60 = vector.load %arg6[%c0_31, %c0_32] : memref<8x128xf32, #tpu.memory_space<vmem>>, vector<8x128xf32>
    %61 = arith.mulf %40, %52 : vector<8x128xf32>
    %62 = arith.addf %60, %61 : vector<8x128xf32>
    %c0_33 = arith.constant 0 : index
    %c0_34 = arith.constant 0 : index
    %63 = vector.load %arg6[%c0_33, %c0_34] : memref<8x128xf32, #tpu.memory_space<vmem>>, vector<8x128xf32>
    tpu.vector_store %arg6[%c0_33, %c0_34], %62 {strides = array<i32>} : memref<8x128xf32, #tpu.memory_space<vmem>>, vector<8x128xf32>,
    %c0_35 = arith.constant 0 : index
    %c0_36 = arith.constant 0 : index
    %64 = vector.load %arg7[%c0_35, %c0_36] : memref<8x128xf32, #tpu.memory_space<vmem>>, vector<8x128xf32>
    %65 = arith.addf %64, %40 : vector<8x128xf32>
    %c0_37 = arith.constant 0 : index
    %c0_38 = arith.constant 0 : index
    %66 = vector.load %arg7[%c0_37, %c0_38] : memref<8x128xf32, #tpu.memory_space<vmem>>, vector<8x128xf32>
    tpu.vector_store %arg7[%c0_37, %c0_38], %65 {strides = array<i32>} : memref<8x128xf32, #tpu.memory_space<vmem>>, vector<8x128xf32>,
    %c2_i32 = arith.constant 2 : i32
    %c0_i32_39 = arith.constant 0 : i32
    %67 = arith.cmpi eq, %arg1, %c0_i32_39 : i32
    %68 = arith.extui %67 : i1 to i32
    %c0_i32_40 = arith.constant 0 : i32
    %69 = arith.cmpi ne, %68, %c0_i32_40 : i32
    scf.if %69 {
      %c0_41 = arith.constant 0 : index
      %c0_42 = arith.constant 0 : index
      %70 = vector.load %arg5[%c0_41, %c0_42] : memref<8x128xf32, #tpu.memory_space<vmem>>, vector<8x128xf32>
      %71 = vector.shape_cast %70 : vector<8x128xf32> to vector<1x8x128xf32>
      %cst_43 = arith.constant dense<0.000000e+00> : vector<1xf32>
      %72 = vector.multi_reduction <add>, %71, %cst_43 [1, 2] : vector<1x8x128xf32> to vector<1xf32>
      %73 = vector.shape_cast %72 : vector<1xf32> to vector<1x1x1xf32>
      %74 = vector.extract %73[0, 0, 0] : f32 from vector<1x1x1xf32>
      %c0_44 = arith.constant 0 : index
      %c0_45 = arith.constant 0 : index
      %75 = memref.load %arg4[%c0_44, %c0_45] : memref<1x4xf32, #tpu.memory_space<smem>>
      memref.store %74, %arg4[%c0_44, %c0_45] : memref<1x4xf32, #tpu.memory_space<smem>>
      %c0_46 = arith.constant 0 : index
      %c0_47 = arith.constant 0 : index
      %76 = vector.load %arg6[%c0_46, %c0_47] : memref<8x128xf32, #tpu.memory_space<vmem>>, vector<8x128xf32>
      %77 = vector.shape_cast %76 : vector<8x128xf32> to vector<1x8x128xf32>
      %cst_48 = arith.constant dense<0.000000e+00> : vector<1xf32>
      %78 = vector.multi_reduction <add>, %77, %cst_48 [1, 2] : vector<1x8x128xf32> to vector<1xf32>
      %79 = vector.shape_cast %78 : vector<1xf32> to vector<1x1x1xf32>
      %80 = vector.extract %79[0, 0, 0] : f32 from vector<1x1x1xf32>
      %c0_49 = arith.constant 0 : index
      %c1 = arith.constant 1 : index
      %81 = memref.load %arg4[%c0_49, %c1] : memref<1x4xf32, #tpu.memory_space<smem>>
      memref.store %80, %arg4[%c0_49, %c1] : memref<1x4xf32, #tpu.memory_space<smem>>
      %c0_50 = arith.constant 0 : index
      %c0_51 = arith.constant 0 : index
      %82 = vector.load %arg7[%c0_50, %c0_51] : memref<8x128xf32, #tpu.memory_space<vmem>>, vector<8x128xf32>
      %83 = vector.shape_cast %82 : vector<8x128xf32> to vector<1x8x128xf32>
      %cst_52 = arith.constant dense<0.000000e+00> : vector<1xf32>
      %84 = vector.multi_reduction <add>, %83, %cst_52 [1, 2] : vector<1x8x128xf32> to vector<1xf32>
      %85 = vector.shape_cast %84 : vector<1xf32> to vector<1x1x1xf32>
      %86 = vector.extract %85[0, 0, 0] : f32 from vector<1x1x1xf32>
      %c0_53 = arith.constant 0 : index
      %c2 = arith.constant 2 : index
      %87 = memref.load %arg4[%c0_53, %c2] : memref<1x4xf32, #tpu.memory_space<smem>>
      memref.store %86, %arg4[%c0_53, %c2] : memref<1x4xf32, #tpu.memory_space<smem>>
      %cst_54 = arith.constant 0.000000e+00 : f32
      %c0_55 = arith.constant 0 : index
      %c3 = arith.constant 3 : index
      %88 = memref.load %arg4[%c0_55, %c3] : memref<1x4xf32, #tpu.memory_space<smem>>
      memref.store %cst_54, %arg4[%c0_55, %c3] : memref<1x4xf32, #tpu.memory_space<smem>>
    } else {
    }
    return
  }
  func.func @transform_0(%arg0: i32, %arg1: i32) -> (i32, i32) {
    %c1_i32 = arith.constant 1 : i32
    %0 = arith.muli %arg0, %c1_i32 : i32
    %1 = arith.addi %0, %arg1 : i32
    %c0_i32 = arith.constant 0 : i32
    %c0_i32_0 = arith.constant 0 : i32
    return %1, %c0_i32 : i32, i32
  }
  func.func @transform_1(%arg0: i32, %arg1: i32) -> (i32, i32) {
    %c1_i32 = arith.constant 1 : i32
    %0 = arith.muli %arg0, %c1_i32 : i32
    %1 = arith.addi %0, %arg1 : i32
    %c0_i32 = arith.constant 0 : i32
    %c0_i32_0 = arith.constant 0 : i32
    return %1, %c0_i32 : i32, i32
  }
  func.func @transform_2(%arg0: i32, %arg1: i32) -> (i32, i32) {
    %c0_i32 = arith.constant 0 : i32
    %c0_i32_0 = arith.constant 0 : i32
    return %arg0, %c0_i32 : i32, i32
  }
}

</mosaic_0001>

<llo_original>
// kernel: weighted_bce_loss.1
$region0: #{weighted_bce_loss.1}
  #allocation0 [shape = 'u32[]', space=smem, size = 0x4, offset = 0x4, fixed_abs, tag = 'smem constant byte address 0x4 - core index']
  #allocation1 [shape = 'u32[144,128]{1,0:T(1,128)}', space=vmem, size = 0x12000, scoped, tag = 'internal scratch']
  #allocation2 [shape = 'f32[8,128]{1,0:T(8,128)}', space=vmem, size = 0x1000, scoped, tag = 'scratch operand']
  #allocation3 [shape = 'f32[8,128]{1,0:T(8,128)}', space=vmem, size = 0x1000, scoped, tag = 'scratch operand']
  #allocation4 [shape = 'f32[8,128]{1,0:T(8,128)}', space=vmem, size = 0x1000, scoped, tag = 'scratch operand']
  %s0 = inlined_call_operand.vmem [shape: f32[16,128], index: 0, kind: input, shape index: {}]
  %s1 = inlined_call_operand.vmem [shape: f32[16,128], index: 1, kind: input, shape index: {}]
  %s2 = inlined_call_operand.vmem [shape: f32[1,4], index: 2, kind: output, shape index: {}]
  %s3 = sld [smem:[#allocation0]]
  $region26: #{weighted_bce_loss.1} parent=0
    _
  %s5 = ssub.s32 1, %s3
  %s6 = scalar_select 0, %s5, %s3
  $region1: #{weighted_bce_loss.1} parent=0
    #allocation5 [shape = 'u8[512]{0}', space=smem, size = 0x200, scoped, tag = 'output window, operand 0, single buffered']
    #allocation6 [shape = 's32[1]{0}', space=sflag, size = 0x4, scoped, tag = 'scoped memory for weighted_bce_loss.1']
    %7 = vsyncpa [#allocation6], 0
    // Predicated region
    $region2: #{weighted_bce_loss.1} parent=1 // pred_check
      _
    $region3: #{weighted_bce_loss.1} parent=1 // pred_check_branch
      %9 = sbr.rel (0) target = $region5
    $region4: #{weighted_bce_loss.1} parent=1 // pred_region
      %s10 = sadd.s32 0, 0
      %s11 = smul.u32 2, %s10
      %p12 = scmp.lt.s32.totalorder %s11, 1
      %s13 = scalar_select %p12, %s11, 1
      %s14 = smul.addr %s13, 8
      %s15 = scalar_lea.vmem %s0, %s14
      %s16 = sadd.s32 0, 0
      %s17 = smul.u32 2, %s16
    $region5: #{weighted_bce_loss.1} parent=1 // pred_fallthru
      _
    // Predicated region
    $region6: #{weighted_bce_loss.1} parent=1 // pred_check
      _
    $region7: #{weighted_bce_loss.1} parent=1 // pred_check_branch
      %19 = sbr.rel (0) target = $region9
    $region8: #{weighted_bce_loss.1} parent=1 // pred_region
      %s20 = sadd.s32 0, 0
      %s21 = smul.u32 2, %s20
      %p22 = scmp.lt.s32.totalorder %s21, 1
      %s23 = scalar_select %p22, %s21, 1
      %s24 = smul.addr %s23, 8
      %s25 = scalar_lea.vmem %s1, %s24
      %s26 = sadd.s32 0, 0
      %s27 = smul.u32 2, %s26
    $region9: #{weighted_bce_loss.1} parent=1 // pred_fallthru
      _
    %s28 = sadd.s32 0, 0
    %s29 = smul.u32 2, %s28
    %p30 = scmp.lt.s32.totalorder %s29, 1
    %s31 = scalar_select %p30, %s29, 1
    %s32 = smul.addr %s31, 8
    %s33 = scalar_lea.vmem %s0, %s32
    %s34 = sadd.s32 0, 0
    %s35 = smul.u32 2, %s34
    %p36 = scmp.lt.s32.totalorder %s35, 1
    %s37 = scalar_select %p36, %s35, 1
    %s38 = smul.addr %s37, 8
    %s39 = scalar_lea.vmem %s1, %s38
    %s40 = sadd.s32 0, 0
    %s41 = smul.u32 2, %s40
    %p42 = scmp.lt.s32.totalorder %s41, 1
    %s43 = scalar_select %p42, %s41, 1
    %s44 = smul.addr %s43, 8
    %s45 = scalar_lea.vmem %s0, %s44
    %s46 = sadd.s32 0, 0
    %s47 = smul.u32 2, %s46
    %s48 = sadd.s32 0, 0
    %s49 = smul.u32 2, %s48
    %p50 = scmp.lt.s32.totalorder %s49, 1
    %s51 = scalar_select %p50, %s49, 1
    %s52 = smul.addr %s51, 8
    %s53 = scalar_lea.vmem %s1, %s52
    %s54 = sadd.s32 0, 0
    %s55 = smul.u32 2, %s54
    %p56 = scmp.eq.s32.totalorder 0, 0
    // Predicated region
    $region10: #{weighted_bce_loss.1} parent=1 // pred_check
      %p57 = pneg %p56
    $region11: #{weighted_bce_loss.1} parent=1 // pred_check_branch
      %59 = sbr.rel (%p57) target = $region13
    $region12: #{weighted_bce_loss.1} parent=1 // pred_region
      %60 = vst [vmem:[#allocation2] sm:$0xff] 0.0
      %61 = vst [vmem:[#allocation3] sm:$0xff] 0.0
      %62 = vst [vmem:[#allocation4] sm:$0xff] 0.0
    $region13: #{weighted_bce_loss.1} parent=1 // pred_fallthru
      _
    %v63 = vld [vmem:[%s45] sm:$0xff]
    %v64 = vld [vmem:[%s53] sm:$0xff]
    %v65 = vand.u32 2147483647, %v63
    %v66 = vsub.f32 0.0, %v65
    %v67 = vmul.f32 %v66, 1.442695
    %v68 = vpow.pop %v67
    %v69 = vadd.f32 %v68, 1.0
    %v70 = vlog2.pop %v69
    %v71 = vmul.f32 %v70, 0.6931472
    %v72 = vsub.f32 0.0, %v63
    %v73 = vmax.f32 %v72, 0.0
    %v74 = vadd.f32 %v71, %v73
    %v75 = vld [vmem:[#allocation2] sm:$0xff]
    %v76 = vsub.f32 1.0, %v64
    %v77 = vmul.f32 %v76, %v63
    %v78 = vadd.f32 %v77, %v74
    %v79 = vadd.f32 %v75, %v78
    %80 = vst [vmem:[#allocation2] sm:$0xff] %v79
    %v81 = vld [vmem:[#allocation3] sm:$0xff]
    %v82 = vmul.f32 %v64, %v74
    %v83 = vadd.f32 %v81, %v82
    %84 = vst [vmem:[#allocation3] sm:$0xff] %v83
    %v85 = vld [vmem:[#allocation4] sm:$0xff]
    %v86 = vadd.f32 %v85, %v64
    %87 = vst [vmem:[#allocation4] sm:$0xff] %v86
    %s88 = scalar_lea.vmem %s45, 8
    %v89 = vld [vmem:[%s88] sm:$0xff]
    %s90 = scalar_lea.vmem %s53, 8
    %v91 = vld [vmem:[%s90] sm:$0xff]
    %v92 = vand.u32 2147483647, %v89
    %v93 = vsub.f32 0.0, %v92
    %v94 = vmul.f32 %v93, 1.442695
    %v95 = vpow.pop %v94
    %v96 = vadd.f32 %v95, 1.0
    %v97 = vlog2.pop %v96
    %v98 = vmul.f32 %v97, 0.6931472
    %v99 = vsub.f32 0.0, %v89
    %v100 = vmax.f32 %v99, 0.0
    %v101 = vadd.f32 %v98, %v100
    %v102 = vld [vmem:[#allocation2] sm:$0xff]
    %v103 = vsub.f32 1.0, %v91
    %v104 = vmul.f32 %v103, %v89
    %v105 = vadd.f32 %v104, %v101
    %v106 = vadd.f32 %v102, %v105
    %107 = vst [vmem:[#allocation2] sm:$0xff] %v106
    %v108 = vld [vmem:[#allocation3] sm:$0xff]
    %v109 = vmul.f32 %v91, %v101
    %v110 = vadd.f32 %v108, %v109
    %111 = vst [vmem:[#allocation3] sm:$0xff] %v110
    %v112 = vld [vmem:[#allocation4] sm:$0xff]
    %v113 = vadd.f32 %v112, %v91
    %114 = vst [vmem:[#allocation4] sm:$0xff] %v113
    // Predicated region
    $region14: #{weighted_bce_loss.1} parent=1 // pred_check
      %p115 = pneg %p56
    $region15: #{weighted_bce_loss.1} parent=1 // pred_check_branch
      %117 = sbr.rel (%p115) target = $region17
    $region16: #{weighted_bce_loss.1} parent=1 // pred_region
      %v118 = vld [vmem:[#allocation2] sm:$0xff]
      %119 = vadd.xlane.f32.xlu0 %v118
      %v120 = vpop.xlane.xlu0 %119
      %v121 = vrot.slane %v120, 4
      %v122 = vadd.f32 %v120, %v121
      %v123 = vrot.slane %v122, 2
      %v124 = vadd.f32 %v122, %v123
      %v125 = vrot.slane %v124, 1
      %v126 = vadd.f32 %v124, %v125
      %s127 = vtos %v126
      %s128 = scalar_lea.smem [#allocation5], 0
      %129 = sst [smem:[%s128]] %s127
      %v130 = vld [vmem:[#allocation3] sm:$0xff]
      %131 = vadd.xlane.f32.xlu0 %v130
      %v132 = vpop.xlane.xlu0 %131
      %v133 = vrot.slane %v132, 4
      %v134 = vadd.f32 %v132, %v133
      %v135 = vrot.slane %v134, 2
      %v136 = vadd.f32 %v134, %v135
      %v137 = vrot.slane %v136, 1
      %v138 = vadd.f32 %v136, %v137
      %s139 = vtos %v138
      %s140 = scalar_lea.smem [#allocation5], 1
      %141 = sst [smem:[%s140]] %s139
      %v142 = vld [vmem:[#allocation4] sm:$0xff]
      %143 = vadd.xlane.f32.xlu0 %v142
      %v144 = vpop.xlane.xlu0 %143
      %v145 = vrot.slane %v144, 4
      %v146 = vadd.f32 %v144, %v145
      %v147 = vrot.slane %v146, 2
      %v148 = vadd.f32 %v146, %v147
      %v149 = vrot.slane %v148, 1
      %v150 = vadd.f32 %v148, %v149
      %s151 = vtos %v150
      %s152 = scalar_lea.smem [#allocation5], 2
      %153 = sst [smem:[%s152]] %s151
      %s154 = scalar_lea.smem [#allocation5], 3
      %155 = sst [smem:[%s154]] 0.0
    $region17: #{weighted_bce_loss.1} parent=1 // pred_fallthru
      _
    // Predicated region
    $region18: #{weighted_bce_loss.1} parent=1 // pred_check
      _
    $region19: #{weighted_bce_loss.1} parent=1 // pred_check_branch
      %157 = sbr.rel (0) target = $region21
    $region20: #{weighted_bce_loss.1} parent=1 // pred_region
      %s159 = ssub.s32 16, 16
      %160 = vsyncadd [#allocation6], %s159
      %s162 = sshll.u32 %s2, 4
      %s163 = int_to_ptr.vmem [resolvable:$true] %s162
      %165 = dma.smem_to_vmem [#allocation5], 16, %s163, [#allocation6]
    $region21: #{weighted_bce_loss.1} parent=1 // pred_fallthru
      _
    // Predicated region
    $region22: #{weighted_bce_loss.1} parent=1 // pred_check
      _
    $region23: #{weighted_bce_loss.1} parent=1 // pred_check_branch
      %167 = sbr.rel (0) target = $region25
    $region24: #{weighted_bce_loss.1} parent=1 // pred_region
      %168 = dma.done [#allocation6], 16
    $region25: #{weighted_bce_loss.1} parent=1 // pred_fallthru
      _
    %169 = sfence
    %170 = vsyncpa [#allocation6], 1

</llo_original>
